<compile_context>
chip_gen: v7x
topology: tpu7x:2x2x1
jax: 0.10.0
libtpu: 0.0.40
codegen_flags: <defaults>
</compile_context>

<pallas_src>
import functools

import jax
import jax.numpy as jnp
from jax.experimental import pallas as pl
from jax.experimental.pallas import tpu as pltpu

_LANE = 128
_SUBLANE = 8


def _round_up(x, m):
    return (x + m - 1) // m * m


def _vmem_capacity_bytes():
    """Physical VMEM per TensorCore (generation-aware), with a safe fallback."""
    try:
        cap = int(pltpu.get_tpu_info().vmem_capacity_bytes)
        if cap > 0:
            return cap
    except Exception:
        pass
    return 64 * 1024 * 1024  # v7x has the smallest VMEM; safe lower bound


def _vmem_limit_bytes(needed_bytes, capacity):
    """Scoped-VMEM limit: enough for our buffers + headroom, below physical."""
    return int(min(capacity - (8 << 20), max(needed_bytes + (8 << 20), 32 << 20)))


# -----------------------------------------------------------------------------
# Single-pass kernel: one (n_batch, tile_d) block per grid step, exact stats.
# -----------------------------------------------------------------------------
def _bn_single_pass_kernel(x_ref, gamma_ref, beta_ref, o_ref, *, eps):
    x = x_ref[...]
    if x.dtype != jnp.float32:
        x = x.astype(jnp.float32)
    inv_n = jnp.float32(1.0 / x.shape[0])

    # One-pass stats: sum(x), sum(x*x) -> mean, biased variance.
    s = jnp.sum(x, axis=0, keepdims=True)            # (1, tile_d)
    sq = jnp.sum(x * x, axis=0, keepdims=True)       # (1, tile_d)
    mu = s * inv_n
    # Clamp: E[x^2]-E[x]^2 in f32 can come out slightly negative.
    var = jnp.maximum(sq * inv_n - mu * mu, 0.0)

    inv_std = jax.lax.rsqrt(var + jnp.float32(eps))  # EUP slot (free-ish)
    scale = gamma_ref[...] * inv_std
    shift = beta_ref[...] - mu * scale
    o_ref[...] = (x * scale + shift).astype(o_ref.dtype)


# -----------------------------------------------------------------------------
# Two-pass kernel (large n_batch): grid = (d_blocks, 2 passes, b_blocks).
# Pass 0 accumulates per-lane sum / sum-of-squares, pass 1 applies the affine.
# -----------------------------------------------------------------------------
def _bn_two_pass_kernel(x_ref, gamma_ref, beta_ref, o_ref,
                        sum_ref, sq_ref, scale_ref, shift_ref,
                        *, eps, n_batch, tile_b):
    p = pl.program_id(1)          # 0 = stats pass, 1 = apply pass
    i = pl.program_id(2)          # batch-block index
    nb = pl.num_programs(2)

    @pl.when((p == 0) & (i == 0))
    def _init():
        sum_ref[...] = jnp.zeros_like(sum_ref)
        sq_ref[...] = jnp.zeros_like(sq_ref)

    @pl.when(p == 0)
    def _accumulate():
        x = x_ref[...].astype(jnp.float32)
        # Mask rows past the end of the batch (ragged last batch block).
        row = jax.lax.broadcasted_iota(jnp.int32, x.shape, 0)
        x = jnp.where(row < (n_batch - i * tile_b), x, 0.0)
        sum_ref[...] += jnp.sum(x, axis=0, keepdims=True)
        sq_ref[...] += jnp.sum(x * x, axis=0, keepdims=True)

    @pl.when((p == 0) & (i == nb - 1))
    def _finalize():
        inv_n = jnp.float32(1.0 / n_batch)
        mu = sum_ref[...] * inv_n
        var = jnp.maximum(sq_ref[...] * inv_n - mu * mu, 0.0)
        inv_std = jax.lax.rsqrt(var + jnp.float32(eps))
        scale = gamma_ref[...] * inv_std
        scale_ref[...] = scale
        shift_ref[...] = beta_ref[...] - mu * scale

    @pl.when(p == 1)
    def _apply():
        x = x_ref[...].astype(jnp.float32)
        o_ref[...] = (x * scale_ref[...] + shift_ref[...]).astype(o_ref.dtype)


# -----------------------------------------------------------------------------
# Wrapper
# -----------------------------------------------------------------------------
def custom_batchnorm(x, gamma, beta, eps=1e-5, *,
                     tile_d=None, tile_b=None, force_two_pass=False):
    """Batch norm forward for x of shape (n_batch, n_neurons)."""
    n_batch, n_neurons = x.shape
    assert gamma.shape == (n_neurons,) and beta.shape == (n_neurons,)

    itemsize = jnp.dtype(x.dtype).itemsize
    capacity = _vmem_capacity_bytes()
    budget = (capacity * 3) // 4          # leave headroom for compiler scratch

    d_pad = _round_up(n_neurons, _LANE)
    gamma2d = gamma.astype(jnp.float32).reshape(1, n_neurons)
    beta2d = beta.astype(jnp.float32).reshape(1, n_neurons)
    out_shape = jax.ShapeDtypeStruct((n_batch, n_neurons), x.dtype)

    # Per-lane VMEM cost in the single-pass regime:
    #   x block x2 (double-buffered) + out block x2 + gamma/beta f32 blocks x2.
    per_lane_single = 4 * n_batch * itemsize + 16
    single_pass_ok = (not force_two_pass) and per_lane_single * _LANE <= budget

    if single_pass_ok:
        # ---------------- single-pass path ----------------
        if tile_d is None:
            tile_d = (budget // per_lane_single) // _LANE * _LANE
        tile_d = int(max(_LANE, min(int(tile_d), d_pad)))
        # Keep >= 2 neuron blocks when possible so the "parallel" grid axis
        # can be sharded across both TensorCores on v7x (no-op on v5e/v6e).
        if (d_pad // tile_d) < 2 and (d_pad // _LANE) >= 2:
            tile_d = _round_up(pl.cdiv(d_pad, 2), _LANE)

        grid = (pl.cdiv(d_pad, tile_d),)
        needed = per_lane_single * tile_d
        vmem_limit = _vmem_limit_bytes(needed, capacity)

        kernel = functools.partial(_bn_single_pass_kernel, eps=float(eps))
        return pl.pallas_call(
            kernel,
            out_shape=out_shape,
            grid_spec=pltpu.PrefetchScalarGridSpec(
                num_scalar_prefetch=0,
                grid=grid,
                in_specs=[
                    pl.BlockSpec((n_batch, tile_d), lambda j: (0, j)),
                    pl.BlockSpec((1, tile_d), lambda j: (0, j)),
                    pl.BlockSpec((1, tile_d), lambda j: (0, j)),
                ],
                out_specs=pl.BlockSpec((n_batch, tile_d), lambda j: (0, j)),
            ),
            compiler_params=pltpu.CompilerParams(
                dimension_semantics=("parallel",),
                vmem_limit_bytes=vmem_limit,
            ),
        )(x, gamma2d, beta2d)

    # ---------------- two-pass (large n_batch) path ----------------
    if tile_d is None:
        tile_d = 512
    tile_d = int(max(_LANE, min(_round_up(int(tile_d), _LANE), d_pad)))
    if (d_pad // tile_d) < 2 and (d_pad // _LANE) >= 2:
        tile_d = _round_up(pl.cdiv(d_pad, 2), _LANE)

    if tile_b is None:
        # Per-step VMEM: x block x2 + out block x2 + 4 scratch rows + gamma/beta.
        fixed = (4 * 4 + 16) * tile_d
        tile_b = max(_SUBLANE, ((budget - fixed) // (4 * tile_d * itemsize)))
    tile_b = int(max(_SUBLANE,
                     _round_up(min(int(tile_b), _round_up(n_batch, _SUBLANE)),
                               _SUBLANE)))

    b_blocks = pl.cdiv(n_batch, tile_b)
    d_blocks = pl.cdiv(d_pad, tile_d)
    grid = (d_blocks, 2, b_blocks)

    needed = 4 * tile_b * tile_d * itemsize + (4 * 4 + 16) * tile_d
    vmem_limit = _vmem_limit_bytes(needed, capacity)

    kernel = functools.partial(_bn_two_pass_kernel, eps=float(eps),
                               n_batch=n_batch, tile_b=tile_b)
    return pl.pallas_call(
        kernel,
        out_shape=out_shape,
        grid_spec=pltpu.PrefetchScalarGridSpec(
            num_scalar_prefetch=0,
            grid=grid,
            in_specs=[
                pl.BlockSpec((tile_b, tile_d), lambda j, p, i: (i, j)),
                pl.BlockSpec((1, tile_d), lambda j, p, i: (0, j)),
                pl.BlockSpec((1, tile_d), lambda j, p, i: (0, j)),
            ],
            # During the stats pass (p==0) the output block index is pinned to
            # (0, j) so no garbage block is ever written back; the apply pass
            # (p==1) then writes every batch block exactly once.
            out_specs=pl.BlockSpec((tile_b, tile_d), lambda j, p, i: (i * p, j)),
            scratch_shapes=[
                pltpu.VMEM((1, tile_d), jnp.float32),   # sum
                pltpu.VMEM((1, tile_d), jnp.float32),   # sum of squares
                pltpu.VMEM((1, tile_d), jnp.float32),   # scale
                pltpu.VMEM((1, tile_d), jnp.float32),   # shift
            ],
        ),
        compiler_params=pltpu.CompilerParams(
            dimension_semantics=("parallel", "arbitrary", "arbitrary"),
            vmem_limit_bytes=vmem_limit,
        ),
    )(x, gamma2d, beta2d)


class CustomBatchNormManualModuleJAX:
    """JAX/Pallas mirror of CustomBatchNormManualModule (forward only)."""

    # TODO(synk): backward pass (custom autograd.Function.backward) not implemented.

    def __init__(self, n_neurons, eps=1e-5):
        self.n_neurons = n_neurons
        self.eps = eps
        # matches nn.Parameter(torch.ones/zeros)
        self.gamma = jnp.ones((n_neurons,), dtype=jnp.float32)
        self.beta = jnp.zeros((n_neurons,), dtype=jnp.float32)

    def __call__(self, x):
        if x.shape[1] != self.n_neurons:
            raise Exception(
                f"Size DOES matter! Received {x.shape}, expected {self.n_neurons}"
            )
        return custom_batchnorm(x, self.gamma, self.beta, self.eps)


if __name__ == "__main__":
    key = jax.random.PRNGKey(0)
    k1, k2 = jax.random.split(key)

    # Small shape matching the module's (n_batch, n_neurons) signature.
    n_batch, n_neurons = 8, 32
    x = jax.random.normal(k1, (n_batch, n_neurons), dtype=jnp.float32) * 2.0 + 0.5

    module = CustomBatchNormManualModuleJAX(n_neurons, eps=1e-5)
    out = jax.block_until_ready(module(x))

    # reference check in plain JAX (mirrors the PyTorch forward math)
    mu = x.mean(axis=0)
    var = x.var(axis=0)  # biased, same as torch.var(unbiased=False)
    ref = module.gamma * ((x - mu) / jnp.sqrt(var + module.eps)) + module.beta
    assert out.shape == ref.shape
    assert jnp.allclose(out, ref, atol=1e-4, rtol=1e-4), "single-pass mismatch"

    # Also exercise the two-pass (large-batch fallback) path with forced small
    # tiles and ragged batch / neuron tails.
    nb2, nn2 = 52, 200
    x2 = jax.random.normal(k2, (nb2, nn2), dtype=jnp.float32) * 3.0 - 1.0
    g2 = jnp.linspace(0.5, 1.5, nn2, dtype=jnp.float32)
    b2 = jnp.linspace(-1.0, 1.0, nn2, dtype=jnp.float32)
    out2 = jax.block_until_ready(
        custom_batchnorm(x2, g2, b2, eps=1e-5, tile_d=128, tile_b=16,
                         force_two_pass=True))
    mu2 = x2.mean(axis=0)
    var2 = x2.var(axis=0)
    ref2 = g2 * ((x2 - mu2) / jnp.sqrt(var2 + 1e-5)) + b2
    assert out2.shape == ref2.shape
    assert jnp.allclose(out2, ref2, atol=1e-4, rtol=1e-4), "two-pass mismatch"

    print("KERNEL_OK")
</pallas_src>

<mosaic_0001>
module attributes {stable_mosaic.version = 11 : i64} {
  func.func @_bn_single_pass_kernel(%arg0: i32, %arg1: memref<8x128xf32, #tpu.memory_space<vmem>>, %arg2: memref<1x128xf32, #tpu.memory_space<vmem>>, %arg3: memref<1x128xf32, #tpu.memory_space<vmem>>, %arg4: memref<8x128xf32, #tpu.memory_space<vmem>>) attributes {dimension_semantics = [#tpu.dimension_semantics<parallel>], iteration_bounds = array<i64: 1>, scalar_prefetch = 0 : i64, scratch_operands = 0 : i64, tpu.core_type = #tpu.core_type<tc>, window_params = [{transform_indices = @transform_0, window_bounds = array<i64: 8, 128>}, {transform_indices = @transform_1, window_bounds = array<i64: 1, 128>}, {transform_indices = @transform_2, window_bounds = array<i64: 1, 128>}, {transform_indices = @transform_3, window_bounds = array<i64: 8, 128>}]} {
    %c0 = arith.constant 0 : index
    %c0_0 = arith.constant 0 : index
    %0 = vector.load %arg1[%c0, %c0_0] : memref<8x128xf32, #tpu.memory_space<vmem>>, vector<8x128xf32>
    %cst = arith.constant dense<0.000000e+00> : vector<128xf32>
    %1 = vector.multi_reduction <add>, %0, %cst [0] : vector<8x128xf32> to vector<128xf32>
    %2 = vector.shape_cast %1 : vector<128xf32> to vector<1x128xf32>
    %3 = arith.mulf %0, %0 : vector<8x128xf32>
    %cst_1 = arith.constant dense<0.000000e+00> : vector<128xf32>
    %4 = vector.multi_reduction <add>, %3, %cst_1 [0] : vector<8x128xf32> to vector<128xf32>
    %5 = vector.shape_cast %4 : vector<128xf32> to vector<1x128xf32>
    %cst_2 = arith.constant 1.250000e-01 : f32
    %6 = vector.broadcast %cst_2 : f32 to vector<1x128xf32>
    %7 = arith.mulf %2, %6 : vector<1x128xf32>
    %cst_3 = arith.constant 1.250000e-01 : f32
    %8 = vector.broadcast %cst_3 : f32 to vector<1x128xf32>
    %9 = arith.mulf %5, %8 : vector<1x128xf32>
    %10 = arith.mulf %7, %7 : vector<1x128xf32>
    %11 = arith.subf %9, %10 : vector<1x128xf32>
    %cst_4 = arith.constant 0.000000e+00 : f32
    %12 = vector.broadcast %cst_4 : f32 to vector<1x128xf32>
    %13 = arith.maximumf %11, %12 : vector<1x128xf32>
    %cst_5 = arith.constant 9.99999974E-6 : f32
    %14 = vector.broadcast %cst_5 : f32 to vector<1x128xf32>
    %15 = arith.addf %13, %14 : vector<1x128xf32>
    %16 = math.rsqrt %15 : vector<1x128xf32>
    %c0_6 = arith.constant 0 : index
    %c0_7 = arith.constant 0 : index
    %17 = vector.load %arg2[%c0_6, %c0_7] : memref<1x128xf32, #tpu.memory_space<vmem>>, vector<1x128xf32>
    %18 = arith.mulf %17, %16 : vector<1x128xf32>
    %c0_8 = arith.constant 0 : index
    %c0_9 = arith.constant 0 : index
    %19 = vector.load %arg3[%c0_8, %c0_9] : memref<1x128xf32, #tpu.memory_space<vmem>>, vector<1x128xf32>
    %20 = arith.mulf %7, %18 : vector<1x128xf32>
    %21 = arith.subf %19, %20 : vector<1x128xf32>
    %22 = vector.broadcast %18 : vector<1x128xf32> to vector<8x128xf32>
    %23 = arith.mulf %0, %22 : vector<8x128xf32>
    %24 = vector.broadcast %21 : vector<1x128xf32> to vector<8x128xf32>
    %25 = arith.addf %23, %24 : vector<8x128xf32>
    %c0_10 = arith.constant 0 : index
    %c0_11 = arith.constant 0 : index
    %26 = vector.load %arg4[%c0_10, %c0_11] : memref<8x128xf32, #tpu.memory_space<vmem>>, vector<8x128xf32>
    tpu.vector_store %arg4[%c0_10, %c0_11], %25 {strides = array<i32>} : memref<8x128xf32, #tpu.memory_space<vmem>>, vector<8x128xf32>,
    return
  }
  func.func @transform_0(%arg0: i32) -> (i32, i32) {
    %c0_i32 = arith.constant 0 : i32
    %c0_i32_0 = arith.constant 0 : i32
    return %c0_i32, %arg0 : i32, i32
  }
  func.func @transform_1(%arg0: i32) -> (i32, i32) {
    %c0_i32 = arith.constant 0 : i32
    %c0_i32_0 = arith.constant 0 : i32
    return %c0_i32, %arg0 : i32, i32
  }
  func.func @transform_2(%arg0: i32) -> (i32, i32) {
    %c0_i32 = arith.constant 0 : i32
    %c0_i32_0 = arith.constant 0 : i32
    return %c0_i32, %arg0 : i32, i32
  }
  func.func @transform_3(%arg0: i32) -> (i32, i32) {
    %c0_i32 = arith.constant 0 : i32
    %c0_i32_0 = arith.constant 0 : i32
    return %c0_i32, %arg0 : i32, i32
  }
}

</mosaic_0001>

<llo_original>
// kernel: tpu_custom_call.1
$region0: #{tpu_custom_call.1}
  #allocation0 [shape = 'u32[]', space=smem, size = 0x4, offset = 0x4, fixed_abs, tag = 'smem constant byte address 0x4 - core index']
  #allocation1 [shape = 'u32[144,128]{1,0:T(1,128)}', space=vmem, size = 0x12000, scoped, tag = 'internal scratch']
  %s0 = inlined_call_operand.hbm [shape: f32[8,32], index: 0, kind: input, shape index: {}]
  %s1 = inlined_call_operand.vmem [shape: f32[1,32], index: 1, kind: input, shape index: {}]
  %s2 = inlined_call_operand.vmem [shape: f32[1,32], index: 2, kind: input, shape index: {}]
  %s3 = inlined_call_operand.hbm [shape: f32[8,32], index: 3, kind: output, shape index: {}]
  %s4 = sld [smem:[#allocation0]]
  $region26: #{tpu_custom_call.1} parent=0
    _
  %s6 = ssub.s32 1, %s4
  %s7 = scalar_select 0, %s6, %s4
  $region1: #{tpu_custom_call.1} parent=0
    #allocation2 [shape = 'u8[4096]{0}', space=vmem, size = 0x1000, scoped, tag = 'input window, operand 0, single buffered']
    #allocation3 [shape = 's32[1]{0}', space=sflag, size = 0x4, scoped, tag = 'scoped memory for tpu_custom_call.1']
    #allocation4 [shape = 's32[1]{0}', space=sflag, size = 0x4, scoped, tag = 'scoped memory for tpu_custom_call.1']
    #allocation5 [shape = 'u8[4096]{0}', space=vmem, size = 0x1000, scoped, tag = 'output window, operand 0, single buffered']
    %8 = vsyncpa [#allocation3], 0
    %9 = vsyncpa [#allocation4], 0
    // Predicated region
    $region2: #{tpu_custom_call.1} parent=1 // pred_check
      _
    $region3: #{tpu_custom_call.1} parent=1 // pred_check_branch
      %11 = sbr.rel (0) target = $region5
    $region4: #{tpu_custom_call.1} parent=1 // pred_region
      %s13 = ssub.s32 128, 128
      %14 = vsyncadd [#allocation3], %s13
      %s16 = sshll.u32 [#allocation2], 4
      %s17 = int_to_ptr.vmem [resolvable:$true] %s16
      %19 = dma.hbm_to_vmem [thread:$0]  %s0, 128, %s17, [#allocation3]
    $region5: #{tpu_custom_call.1} parent=1 // pred_fallthru
      _
    // Predicated region
    $region6: #{tpu_custom_call.1} parent=1 // pred_check
      _
    $region7: #{tpu_custom_call.1} parent=1 // pred_check_branch
      %21 = sbr.rel (0) target = $region9
    $region8: #{tpu_custom_call.1} parent=1 // pred_region
      _
    $region9: #{tpu_custom_call.1} parent=1 // pred_fallthru
      _
    // Predicated region
    $region10: #{tpu_custom_call.1} parent=1 // pred_check
      _
    $region11: #{tpu_custom_call.1} parent=1 // pred_check_branch
      %23 = sbr.rel (0) target = $region13
    $region12: #{tpu_custom_call.1} parent=1 // pred_region
      _
    $region13: #{tpu_custom_call.1} parent=1 // pred_fallthru
      _
    // Predicated region
    $region14: #{tpu_custom_call.1} parent=1 // pred_check
      _
    $region15: #{tpu_custom_call.1} parent=1 // pred_check_branch
      %25 = sbr.rel (0) target = $region17
    $region16: #{tpu_custom_call.1} parent=1 // pred_region
      %26 = dma.done [#allocation3], 128
    $region17: #{tpu_custom_call.1} parent=1 // pred_fallthru
      _
    %v27 = vld [vmem:[#allocation2] sm:$0xff]
    %v28 = vrot.slane %v27, 4
    %v29 = vadd.f32 %v27, %v28
    %v30 = vrot.slane %v29, 2
    %v31 = vadd.f32 %v29, %v30
    %v32 = vrot.slane %v31, 1
    %v33 = vadd.f32 %v31, %v32
    %v34 = vmul.f32 %v27, %v27
    %v35 = vrot.slane %v34, 4
    %v36 = vadd.f32 %v34, %v35
    %v37 = vrot.slane %v36, 2
    %v38 = vadd.f32 %v36, %v37
    %v39 = vrot.slane %v38, 1
    %v40 = vadd.f32 %v38, %v39
    %v41 = vmul.f32 %v33, 0.125
    %v42 = vmul.f32 %v40, 0.125
    %v43 = vmul.f32 %v41, %v41
    %v44 = vsub.f32 %v42, %v43
    %v45 = vmax.f32 %v44, 0.0
    %v46 = vadd.f32 %v45, 1e-05
    %v47 = vrsqrt.pop %v46
    %v48 = vld [vmem:[%s1] sm:$0x1]
    %v49 = vmul.f32 %v48, %v47
    %v50 = vld [vmem:[%s2] sm:$0x1]
    %v51 = vmul.f32 %v41, %v49
    %v52 = vsub.f32 %v50, %v51
    %v54 = vlaneseq
    %v55 = vshrl.u32 %v54, 7
    %v56 = vsub.s32 0, %v55
    %v57 = vrot.slane %v49, %v56
    %v59 = vmul.f32 %v27, %v57
    %v61 = vlaneseq
    %v62 = vshrl.u32 %v61, 7
    %v63 = vsub.s32 0, %v62
    %v64 = vrot.slane %v52, %v63
    %v66 = vadd.f32 %v59, %v64
    %67 = vst [vmem:[#allocation5] sm:$0xff] %v66
    // Predicated region
    $region18: #{tpu_custom_call.1} parent=1 // pred_check
      _
    $region19: #{tpu_custom_call.1} parent=1 // pred_check_branch
      %69 = sbr.rel (0) target = $region21
    $region20: #{tpu_custom_call.1} parent=1 // pred_region
      %s71 = ssub.s32 128, 128
      %72 = vsyncadd [#allocation4], %s71
      %s74 = sshll.u32 [#allocation5], 4
      %s75 = int_to_ptr.vmem [resolvable:$true] %s74
      %77 = dma.vmem_to_hbm [thread:$0]  %s75, 128, %s3, [#allocation4]
    $region21: #{tpu_custom_call.1} parent=1 // pred_fallthru
      _
    // Predicated region
    $region22: #{tpu_custom_call.1} parent=1 // pred_check
      _
    $region23: #{tpu_custom_call.1} parent=1 // pred_check_branch
      %79 = sbr.rel (0) target = $region25
    $region24: #{tpu_custom_call.1} parent=1 // pred_region
      %80 = dma.done [#allocation4], 128
    $region25: #{tpu_custom_call.1} parent=1 // pred_fallthru
      _
    %81 = vsyncpa [#allocation3], 1
    %82 = vsyncpa [#allocation4], 1

</llo_original>
